<compile_context>
chip_gen: v7x
topology: tpu7x:2x2x1
jax: 0.10.0
libtpu: 0.0.40
codegen_flags: <defaults>
</compile_context>

<pallas_src>
import functools

import jax
import jax.numpy as jnp
from jax.experimental import pallas as pl
from jax.experimental.pallas import tpu as pltpu


def _round_up(x, m):
    return ((x + m - 1) // m) * m


def ce_kernel(z_ref, tgt_ref, w1_ref, b1_ref, w2_ref, b2_ref, loss_ref, *, n_rows):
    """One row tile: z -> Linear+ReLU -> Linear -> masked sum of per-row CE."""
    tm = z_ref.shape[0]

    # Row-validity mask: rows >= n_rows (the ragged last tile) are garbage in
    # VMEM and must not contribute.  n_rows is a static Python int.
    row = jax.lax.broadcasted_iota(jnp.int32, (tm, 1), 0) + pl.program_id(0) * tm
    valid = row < n_rows                                               # (tm, 1) bool

    # RevGradLayer forward == identity; zero invalid rows (protects against
    # NaN/Inf garbage in the padded part of the block) and cast to bf16
    # in-kernel so the HBM stream stays the unpadded f32 z.
    z = jnp.where(valid, z_ref[...], 0.0).astype(jnp.bfloat16)        # (tm, D)

    # Linear(input_dim, hidden_dim) + ReLU.  bf16 MXU operands, f32 accumulate.
    h = jnp.dot(z, w1_ref[...], preferred_element_type=jnp.float32) + b1_ref[...]
    h = jnp.maximum(h, 0.0).astype(jnp.bfloat16)                      # (tm, Hp)

    # Linear(hidden_dim, n_phonemes).  Padded classes carry bias -1e9 so they
    # vanish from the logsumexp.
    logits = jnp.dot(h, w2_ref[...], preferred_element_type=jnp.float32) + b2_ref[...]

    # Row-wise cross entropy = logsumexp(logits) - logits[target].
    m = jnp.max(logits, axis=-1, keepdims=True)                       # (tm, 1)
    lse = m + jnp.log(jnp.sum(jnp.exp(logits - m), axis=-1, keepdims=True))

    cls = jax.lax.broadcasted_iota(jnp.int32, logits.shape, 1)        # (tm, Pp)
    tgt_logit = jnp.sum(jnp.where(cls == tgt_ref[...], logits, 0.0),
                        axis=-1, keepdims=True)                       # (tm, 1)

    per_row = jnp.where(valid, lse - tgt_logit, 0.0)                  # (tm, 1)
    # Single store of this tile's partial sum; each grid step owns its own
    # (1,1,1) output block so the grid axis is "parallel" (no accumulator race).
    loss_ref[0] = jnp.sum(per_row, axis=0, keepdims=True)             # (1, 1)


# ---------------------------------------------------------------------------
# RevGrad: identity forward, -alpha * grad backward (the module's defining op).
# ---------------------------------------------------------------------------
@jax.custom_vjp
def rev_grad(x, alpha):
    return x


def _rev_grad_fwd(x, alpha):
    return x, jnp.asarray(alpha, dtype=x.dtype)


def _rev_grad_bwd(alpha, g):
    return (-alpha * g, jnp.zeros_like(alpha))


rev_grad.defvjp(_rev_grad_fwd, _rev_grad_bwd)


def _vmem_estimate(tm, D, Hp, Pp):
    """Full VMEM footprint: double-buffered I/O blocks + in-body intermediates."""
    d_lane = _round_up(D, 128)          # lane padding of the z tile in VMEM
    d_sub = _round_up(D, 16)            # bf16 sublane padding of W1's first dim
    io = 2 * (tm * d_lane * 4           # z tile (f32)
              + tm * 128 * 4            # targets tile (i32, lane-padded)
              + d_sub * Hp * 2          # W1 (bf16, resident but double-buffered)
              + Hp * Pp * 2             # W2 (bf16)
              + 8 * Hp * 4              # b1 (f32, sublane-padded)
              + 8 * Pp * 4              # b2
              + 8 * 128 * 4)            # (1,1,1) partial-loss block
    body = (tm * d_lane * 2             # z cast to bf16
            + tm * Hp * 4               # pre-ReLU f32 h
            + tm * Hp * 2               # h bf16
            + 3 * tm * Pp * 4)          # logits + exp + select temporaries (f32)
    return io + body + (2 << 20)        # + Mosaic internal scratch headroom


def inverse_grad_phoneme_predictor_loss(z, targets, params, alpha=1.0, *, tm_max=2048):
    """z: (B, T, input_dim) f32; targets: (B, T) int; returns scalar mean CE."""
    w1, b1, w2, b2 = params
    B, T, D = z.shape
    N = B * T
    H = w1.shape[1]
    P = w2.shape[1]

    # RevGrad: identity in this forward pass; alpha only scales the reversed
    # gradient (custom_vjp above).
    z = rev_grad(z, alpha)

    # Only the (tiny, resident) weights get lane-dense padding; z stays unpadded.
    Hp = _round_up(H, 128)
    Pp = _round_up(P, 128)
    # TODO(synk): if this ever flips MXU-bound on v6e/v7x, round Hp/Pp to 256
    # (256-wide MXU there); irrelevant while the kernel is z-stream bound.

    # Generation-aware VMEM budget (v5e/v6e: 128 MiB physical; v7x: 64 MiB).
    try:
        info = pltpu.get_tpu_info()
        vmem_cap = int(getattr(info, "vmem_capacity_bytes", 0) or 0)
    except Exception:
        vmem_cap = 0
    if vmem_cap <= 0:
        vmem_cap = 64 << 20             # conservative default: v7x
    if vmem_cap >= (96 << 20):          # v5e / v6e
        scoped_cap = 100 << 20
        tm_gen = 2048
    else:                               # v7x
        scoped_cap = 56 << 20
        tm_gen = 1024

    # Row tile: big enough to amortize the ~0.35 us/step overhead, small enough
    # to (a) fit VMEM and (b) leave >= 2 tiles when N > 256 so the "parallel"
    # axis shards across both TensorCores on v7x.
    tm_cap = max(128, min(tm_max, tm_gen))
    if N <= 256:
        tm = _round_up(max(N, 8), 8)
    else:
        tm = max(128, min(tm_cap, _round_up((N + 1) // 2, 128)))
    while tm > 128 and _vmem_estimate(tm, D, Hp, Pp) > scoped_cap:
        tm -= 128
    vmem_est = _vmem_estimate(tm, D, Hp, Pp)
    assert vmem_est <= scoped_cap, (
        f"weights/tile too large for this chip's VMEM: est {vmem_est} bytes "
        f"> cap {scoped_cap} bytes")

    num_tiles = pl.cdiv(N, tm)

    # Streamed inputs are UNPADDED views (no extra HBM pass); weights are padded
    # once (tiny) and kept resident in bf16, biases in f32 (-1e9 on pad classes).
    z2 = z.reshape(N, D)                                  # f32, cast in-kernel
    t2 = targets.reshape(N, 1).astype(jnp.int32)
    w1p = jnp.zeros((D, Hp), jnp.bfloat16).at[:, :H].set(w1.astype(jnp.bfloat16))
    b1p = jnp.zeros((1, Hp), jnp.float32).at[0, :H].set(b1.astype(jnp.float32))
    w2p = jnp.zeros((Hp, Pp), jnp.bfloat16).at[:H, :P].set(w2.astype(jnp.bfloat16))
    b2p = jnp.full((1, Pp), -1e9, jnp.float32).at[0, :P].set(b2.astype(jnp.float32))

    kernel = functools.partial(ce_kernel, n_rows=N)

    partials = pl.pallas_call(
        kernel,
        out_shape=jax.ShapeDtypeStruct((num_tiles, 1, 1), jnp.float32),
        grid_spec=pltpu.PrefetchScalarGridSpec(
            num_scalar_prefetch=0,
            grid=(num_tiles,),
            in_specs=[
                pl.BlockSpec((tm, D), lambda i: (i, 0)),     # z rows (f32, unpadded)
                pl.BlockSpec((tm, 1), lambda i: (i, 0)),     # targets (i32, unpadded)
                pl.BlockSpec((D, Hp), lambda i: (0, 0)),     # W1 (bf16, resident)
                pl.BlockSpec((1, Hp), lambda i: (0, 0)),     # b1 (f32)
                pl.BlockSpec((Hp, Pp), lambda i: (0, 0)),    # W2 (bf16, resident)
                pl.BlockSpec((1, Pp), lambda i: (0, 0)),     # b2 (f32)
            ],
            out_specs=pl.BlockSpec((1, 1, 1), lambda i: (i, 0, 0)),
        ),
        compiler_params=pltpu.CompilerParams(
            dimension_semantics=("parallel",),
            vmem_limit_bytes=int(scoped_cap)),
    )(z2, t2, w1p, b1p, w2p, b2p)

    # Per-tile f32 partial sums -> final mean in the wrapper.
    return jnp.sum(partials) / N


def init_params(key, input_dim, hidden_dim, n_phonemes):
    """PyTorch-style Linear init: U(-1/sqrt(fan_in), 1/sqrt(fan_in))."""
    k1, k2, k3, k4 = jax.random.split(key, 4)
    s1 = 1.0 / jnp.sqrt(input_dim)
    s2 = 1.0 / jnp.sqrt(hidden_dim)
    w1 = jax.random.uniform(k1, (input_dim, hidden_dim), jnp.float32, -s1, s1)
    b1 = jax.random.uniform(k2, (hidden_dim,), jnp.float32, -s1, s1)
    w2 = jax.random.uniform(k3, (hidden_dim, n_phonemes), jnp.float32, -s2, s2)
    b2 = jax.random.uniform(k4, (n_phonemes,), jnp.float32, -s2, s2)
    return w1, b1, w2, b2


def reference_loss(z, targets, params, *, emulate_bf16=False):
    """Pure-JAX reference.  emulate_bf16=True mimics the kernel's bf16 rounding
    of z / W1 / W2 / h; False is the pure-f32 math."""
    w1, b1, w2, b2 = params
    cast = ((lambda x: x.astype(jnp.bfloat16).astype(jnp.float32))
            if emulate_bf16 else (lambda x: x))
    hi = jax.lax.Precision.HIGHEST
    h = jnp.maximum(jnp.dot(cast(z), cast(w1), precision=hi) + b1, 0.0)
    logits = jnp.dot(cast(h), cast(w2), precision=hi) + b2
    lse = jax.scipy.special.logsumexp(logits, axis=-1)
    tl = jnp.take_along_axis(logits, targets[..., None], axis=-1)[..., 0]
    return jnp.mean(lse - tl)


if __name__ == "__main__":
    B, T = 2, 8               # N = 16 tokens -> single exact (16, D) tile
    input_dim = 32
    hidden_dim = 64
    n_phonemes = 16

    key = jax.random.PRNGKey(0)
    kp, kz, kt = jax.random.split(key, 3)
    params = init_params(kp, input_dim, hidden_dim, n_phonemes)
    z = jax.random.normal(kz, (B, T, input_dim), jnp.float32)
    targets = jax.random.randint(kt, (B, T), 0, n_phonemes, jnp.int32)

    loss = jax.block_until_ready(
        inverse_grad_phoneme_predictor_loss(z, targets, params))

    ref_bf16 = jax.block_until_ready(
        reference_loss(z, targets, params, emulate_bf16=True))
    assert jnp.allclose(loss, ref_bf16, rtol=1e-3, atol=1e-3), (loss, ref_bf16)
    ref_f32 = jax.block_until_ready(
        reference_loss(z, targets, params, emulate_bf16=False))
    assert jnp.allclose(loss, ref_f32, rtol=2e-2, atol=5e-2), (loss, ref_f32)

    # Second config: exercises the multi-tile "parallel" axis and the in-kernel
    # row mask on a ragged last tile (N = 400, tm = 256 -> 2 tiles, 144 masked).
    B2, T2 = 4, 100
    kz2, kt2 = jax.random.split(jax.random.PRNGKey(1))
    zb = jax.random.normal(kz2, (B2, T2, input_dim), jnp.float32)
    tb = jax.random.randint(kt2, (B2, T2), 0, n_phonemes, jnp.int32)
    loss2 = jax.block_until_ready(
        inverse_grad_phoneme_predictor_loss(zb, tb, params))
    ref2 = jax.block_until_ready(
        reference_loss(zb, tb, params, emulate_bf16=True))
    assert jnp.allclose(loss2, ref2, rtol=1e-3, atol=1e-3), (loss2, ref2)

    print("KERNEL_OK")
</pallas_src>

<mosaic_0001>
module attributes {stable_mosaic.version = 11 : i64} {
  func.func @ce_kernel(%arg0: i32, %arg1: memref<16x32xf32, #tpu.memory_space<vmem>>, %arg2: memref<16x1xi32, #tpu.memory_space<vmem>>, %arg3: memref<32x128xbf16, #tpu.memory_space<vmem>>, %arg4: memref<1x128xf32, #tpu.memory_space<vmem>>, %arg5: memref<128x128xbf16, #tpu.memory_space<vmem>>, %arg6: memref<1x128xf32, #tpu.memory_space<vmem>>, %arg7: memref<1x1x1xf32, #tpu.memory_space<vmem>>) attributes {dimension_semantics = [#tpu.dimension_semantics<parallel>], iteration_bounds = array<i64: 1>, scalar_prefetch = 0 : i64, scratch_operands = 0 : i64, tpu.core_type = #tpu.core_type<tc>, window_params = [{transform_indices = @transform_0, window_bounds = array<i64: 16, 32>}, {transform_indices = @transform_1, window_bounds = array<i64: 16, 1>}, {pipeline_mode = #tpu.pipeline_mode<synchronous>, transform_indices = @transform_2, window_bounds = array<i64: 32, 128>}, {pipeline_mode = #tpu.pipeline_mode<synchronous>, transform_indices = @transform_3, window_bounds = array<i64: 1, 128>}, {pipeline_mode = #tpu.pipeline_mode<synchronous>, transform_indices = @transform_4, window_bounds = array<i64: 128, 128>}, {pipeline_mode = #tpu.pipeline_mode<synchronous>, transform_indices = @transform_5, window_bounds = array<i64: 1, 128>}, {transform_indices = @transform_6, window_bounds = array<i64: 1, 1, 1>}]} {
    %0 = tpu.iota {dimensions = array<i32: 0>} : vector<16x1xi32>
    %c16_i32 = arith.constant 16 : i32
    %1 = arith.muli %arg0, %c16_i32 : i32
    %2 = vector.broadcast %1 : i32 to vector<16x1xi32>
    %3 = arith.addi %0, %2 : vector<16x1xi32>
    %c16_i32_0 = arith.constant 16 : i32
    %4 = vector.broadcast %c16_i32_0 : i32 to vector<16x1xi32>
    %5 = arith.cmpi slt, %3, %4 : vector<16x1xi32>
    %c0 = arith.constant 0 : index
    %c0_1 = arith.constant 0 : index
    %6 = vector.load %arg1[%c0, %c0_1] : memref<16x32xf32, #tpu.memory_space<vmem>>, vector<16x32xf32>
    %cst = arith.constant 0.000000e+00 : f32
    %7 = vector.shape_cast %5 : vector<16x1xi1> to vector<16x1xi1>
    %8 = vector.broadcast %7 : vector<16x1xi1> to vector<16x32xi1>
    %9 = vector.broadcast %cst : f32 to vector<16x32xf32>
    %10 = arith.select %8, %6, %9 : vector<16x32xi1>, vector<16x32xf32>
    %11 = arith.truncf %10 : vector<16x32xf32> to vector<16x32xbf16>
    %c0_2 = arith.constant 0 : index
    %c0_3 = arith.constant 0 : index
    %12 = vector.load %arg3[%c0_2, %c0_3] : memref<32x128xbf16, #tpu.memory_space<vmem>>, vector<32x128xbf16>
    %cst_4 = arith.constant dense<0.000000e+00> : vector<16x128xf32>
    %13 = tpu.matmul %11, %12, %cst_4 {dimension_numbers = #tpu.dot_dimension_numbers<[1], [0], [0], [1], [0, 0, 1, 1], [], []>} : vector<16x32xbf16>, vector<32x128xbf16>, vector<16x128xf32> -> vector<16x128xf32>
    %c0_5 = arith.constant 0 : index
    %c0_6 = arith.constant 0 : index
    %14 = vector.load %arg4[%c0_5, %c0_6] : memref<1x128xf32, #tpu.memory_space<vmem>>, vector<1x128xf32>
    %15 = vector.broadcast %14 : vector<1x128xf32> to vector<16x128xf32>
    %16 = arith.addf %13, %15 : vector<16x128xf32>
    %cst_7 = arith.constant 0.000000e+00 : f32
    %17 = vector.broadcast %cst_7 : f32 to vector<16x128xf32>
    %18 = arith.maximumf %16, %17 : vector<16x128xf32>
    %19 = arith.truncf %18 : vector<16x128xf32> to vector<16x128xbf16>
    %c0_8 = arith.constant 0 : index
    %c0_9 = arith.constant 0 : index
    %20 = vector.load %arg5[%c0_8, %c0_9] : memref<128x128xbf16, #tpu.memory_space<vmem>>, vector<128x128xbf16>
    %cst_10 = arith.constant dense<0.000000e+00> : vector<16x128xf32>
    %21 = tpu.matmul %19, %20, %cst_10 {dimension_numbers = #tpu.dot_dimension_numbers<[1], [0], [0], [1], [0, 0, 1, 1], [], []>} : vector<16x128xbf16>, vector<128x128xbf16>, vector<16x128xf32> -> vector<16x128xf32>
    %c0_11 = arith.constant 0 : index
    %c0_12 = arith.constant 0 : index
    %22 = vector.load %arg6[%c0_11, %c0_12] : memref<1x128xf32, #tpu.memory_space<vmem>>, vector<1x128xf32>
    %23 = vector.broadcast %22 : vector<1x128xf32> to vector<16x128xf32>
    %24 = arith.addf %21, %23 : vector<16x128xf32>
    %cst_13 = arith.constant dense<0xFF800000> : vector<16xf32>
    %25 = vector.multi_reduction <maximumf>, %24, %cst_13 [1] : vector<16x128xf32> to vector<16xf32>
    %26 = vector.shape_cast %25 : vector<16xf32> to vector<16x1xf32>
    %27 = vector.broadcast %26 : vector<16x1xf32> to vector<16x128xf32>
    %28 = arith.subf %24, %27 : vector<16x128xf32>
    %29 = math.exp %28 : vector<16x128xf32>
    %cst_14 = arith.constant dense<0.000000e+00> : vector<16xf32>
    %30 = vector.multi_reduction <add>, %29, %cst_14 [1] : vector<16x128xf32> to vector<16xf32>
    %31 = vector.shape_cast %30 : vector<16xf32> to vector<16x1xf32>
    %32 = math.log %31 : vector<16x1xf32>
    %33 = arith.addf %26, %32 : vector<16x1xf32>
    %34 = tpu.iota {dimensions = array<i32: 1>} : vector<16x128xi32>
    %c0_15 = arith.constant 0 : index
    %c0_16 = arith.constant 0 : index
    %35 = vector.load %arg2[%c0_15, %c0_16] : memref<16x1xi32, #tpu.memory_space<vmem>>, vector<16x1xi32>
    %36 = vector.broadcast %35 : vector<16x1xi32> to vector<16x128xi32>
    %37 = arith.cmpi eq, %34, %36 : vector<16x128xi32>
    %cst_17 = arith.constant 0.000000e+00 : f32
    %38 = vector.broadcast %cst_17 : f32 to vector<16x128xf32>
    %39 = arith.select %37, %24, %38 : vector<16x128xi1>, vector<16x128xf32>
    %cst_18 = arith.constant dense<0.000000e+00> : vector<16xf32>
    %40 = vector.multi_reduction <add>, %39, %cst_18 [1] : vector<16x128xf32> to vector<16xf32>
    %41 = vector.shape_cast %40 : vector<16xf32> to vector<16x1xf32>
    %42 = arith.subf %33, %41 : vector<16x1xf32>
    %cst_19 = arith.constant 0.000000e+00 : f32
    %43 = vector.broadcast %cst_19 : f32 to vector<16x1xf32>
    %44 = arith.select %5, %42, %43 : vector<16x1xi1>, vector<16x1xf32>
    %cst_20 = arith.constant dense<0.000000e+00> : vector<1xf32>
    %45 = vector.multi_reduction <add>, %44, %cst_20 [0] : vector<16x1xf32> to vector<1xf32>
    %46 = vector.shape_cast %45 : vector<1xf32> to vector<1x1xf32>
    %c0_21 = arith.constant 0 : index
    %c0_22 = arith.constant 0 : index
    %c0_23 = arith.constant 0 : index
    %47 = vector.load %arg7[%c0_21, %c0_22, %c0_23] : memref<1x1x1xf32, #tpu.memory_space<vmem>>, vector<1x1x1xf32>
    %48 = vector.shape_cast %47 : vector<1x1x1xf32> to vector<1x1xf32>
    %49 = vector.shape_cast %46 : vector<1x1xf32> to vector<1x1x1xf32>
    tpu.vector_store %arg7[%c0_21, %c0_22, %c0_23], %49 {strides = array<i32>} : memref<1x1x1xf32, #tpu.memory_space<vmem>>, vector<1x1x1xf32>,
    return
  }
  func.func @transform_0(%arg0: i32) -> (i32, i32) {
    %c0_i32 = arith.constant 0 : i32
    %c0_i32_0 = arith.constant 0 : i32
    return %arg0, %c0_i32 : i32, i32
  }
  func.func @transform_1(%arg0: i32) -> (i32, i32) {
    %c0_i32 = arith.constant 0 : i32
    %c0_i32_0 = arith.constant 0 : i32
    return %arg0, %c0_i32 : i32, i32
  }
  func.func @transform_2(%arg0: i32) -> (i32, i32) {
    %c0_i32 = arith.constant 0 : i32
    %c0_i32_0 = arith.constant 0 : i32
    %c0_i32_1 = arith.constant 0 : i32
    return %c0_i32, %c0_i32_0 : i32, i32
  }
  func.func @transform_3(%arg0: i32) -> (i32, i32) {
    %c0_i32 = arith.constant 0 : i32
    %c0_i32_0 = arith.constant 0 : i32
    %c0_i32_1 = arith.constant 0 : i32
    return %c0_i32, %c0_i32_0 : i32, i32
  }
  func.func @transform_4(%arg0: i32) -> (i32, i32) {
    %c0_i32 = arith.constant 0 : i32
    %c0_i32_0 = arith.constant 0 : i32
    %c0_i32_1 = arith.constant 0 : i32
    return %c0_i32, %c0_i32_0 : i32, i32
  }
  func.func @transform_5(%arg0: i32) -> (i32, i32) {
    %c0_i32 = arith.constant 0 : i32
    %c0_i32_0 = arith.constant 0 : i32
    %c0_i32_1 = arith.constant 0 : i32
    return %c0_i32, %c0_i32_0 : i32, i32
  }
  func.func @transform_6(%arg0: i32) -> (i32, i32, i32) {
    %c0_i32 = arith.constant 0 : i32
    %c0_i32_0 = arith.constant 0 : i32
    %c0_i32_1 = arith.constant 0 : i32
    return %arg0, %c0_i32, %c0_i32_0 : i32, i32, i32
  }
}

</mosaic_0001>

<llo_original>
// kernel: tpu_custom_call.1
$region0: #{tpu_custom_call.1}
  #allocation0 [shape = 'u32[]', space=smem, size = 0x4, offset = 0x4, fixed_abs, tag = 'smem constant byte address 0x4 - core index']
  #allocation1 [shape = 'u32[144,128]{1,0:T(1,128)}', space=vmem, size = 0x12000, scoped, tag = 'internal scratch']
  %s0 = inlined_call_operand.vmem [shape: f32[16,32], index: 0, kind: input, shape index: {}]
  %s1 = inlined_call_operand.vmem [shape: s32[16,1], index: 1, kind: input, shape index: {}]
  %s2 = inlined_call_operand.hbm [shape: bf16[32,128], index: 2, kind: input, shape index: {}]
  %s3 = inlined_call_operand.vmem [shape: f32[1,128], index: 3, kind: input, shape index: {}]
  %s4 = inlined_call_operand.hbm [shape: bf16[128,128], index: 4, kind: input, shape index: {}]
  %s5 = inlined_call_operand.vmem [shape: f32[1,128], index: 5, kind: input, shape index: {}]
  %s6 = inlined_call_operand.hbm [shape: f32[1,1,1], index: 6, kind: output, shape index: {}]
  %s7 = sld [smem:[#allocation0]]
  $region42: #{tpu_custom_call.1} parent=0
    _
  %s9 = ssub.s32 1, %s7
  %s10 = scalar_select 0, %s9, %s7
  $region1: #{tpu_custom_call.1} parent=0
    #allocation2 [shape = 'u8[8192]{0}', space=vmem, size = 0x2000, scoped, tag = 'input window, operand 2, single buffered']
    #allocation3 [shape = 's32[1]{0}', space=sflag, size = 0x4, scoped, tag = 'scoped memory for tpu_custom_call.1']
    #allocation4 [shape = 's32[1]{0}', space=sflag, size = 0x4, scoped, tag = 'scoped memory for tpu_custom_call.1']
    #allocation5 [shape = 'u8[32768]{0}', space=vmem, size = 0x8000, scoped, tag = 'input window, operand 4, single buffered']
    #allocation6 [shape = 's32[1]{0}', space=sflag, size = 0x4, scoped, tag = 'scoped memory for tpu_custom_call.1']
    #allocation7 [shape = 'u8[512]{0}', space=vmem, size = 0x400, scoped, tag = 'output window, operand 0, single buffered']
    %11 = vsyncpa [#allocation3], 0
    %12 = vsyncpa [#allocation6], 0
    %13 = vsyncpa [#allocation4], 0
    // Predicated region
    $region2: #{tpu_custom_call.1} parent=1 // pred_check
      _
    $region3: #{tpu_custom_call.1} parent=1 // pred_check_branch
      %15 = sbr.rel (0) target = $region5
    $region4: #{tpu_custom_call.1} parent=1 // pred_region
      _
    $region5: #{tpu_custom_call.1} parent=1 // pred_fallthru
      _
    // Predicated region
    $region6: #{tpu_custom_call.1} parent=1 // pred_check
      _
    $region7: #{tpu_custom_call.1} parent=1 // pred_check_branch
      %17 = sbr.rel (0) target = $region9
    $region8: #{tpu_custom_call.1} parent=1 // pred_region
      _
    $region9: #{tpu_custom_call.1} parent=1 // pred_fallthru
      _
    // Predicated region
    $region10: #{tpu_custom_call.1} parent=1 // pred_check
      _
    $region11: #{tpu_custom_call.1} parent=1 // pred_check_branch
      %19 = sbr.rel (0) target = $region13
    $region12: #{tpu_custom_call.1} parent=1 // pred_region
      %s21 = ssub.s32 256, 256
      %22 = vsyncadd [#allocation3], %s21
      %s23 = sshll.u32 [#allocation2], 4
      %s24 = int_to_ptr.vmem [resolvable:$true] %s23
      %29 = dma.hbm_to_vmem [thread:$0]  %s2, 256, %s24, [#allocation3], 64, 64, 4
    $region13: #{tpu_custom_call.1} parent=1 // pred_fallthru
      _
    // Predicated region
    $region14: #{tpu_custom_call.1} parent=1 // pred_check
      _
    $region15: #{tpu_custom_call.1} parent=1 // pred_check_branch
      %31 = sbr.rel (0) target = $region17
    $region16: #{tpu_custom_call.1} parent=1 // pred_region
      _
    $region17: #{tpu_custom_call.1} parent=1 // pred_fallthru
      _
    // Predicated region
    $region18: #{tpu_custom_call.1} parent=1 // pred_check
      _
    $region19: #{tpu_custom_call.1} parent=1 // pred_check_branch
      %33 = sbr.rel (0) target = $region21
    $region20: #{tpu_custom_call.1} parent=1 // pred_region
      %s35 = ssub.s32 1024, 1024
      %36 = vsyncadd [#allocation6], %s35
      %s37 = sshll.u32 [#allocation5], 4
      %s38 = int_to_ptr.vmem [resolvable:$true] %s37
      %43 = dma.hbm_to_vmem [thread:$0]  %s4, 1024, %s38, [#allocation6], 64, 64, 4
    $region21: #{tpu_custom_call.1} parent=1 // pred_fallthru
      _
    // Predicated region
    $region22: #{tpu_custom_call.1} parent=1 // pred_check
      _
    $region23: #{tpu_custom_call.1} parent=1 // pred_check_branch
      %45 = sbr.rel (0) target = $region25
    $region24: #{tpu_custom_call.1} parent=1 // pred_region
      _
    $region25: #{tpu_custom_call.1} parent=1 // pred_fallthru
      _
    // Predicated region
    $region26: #{tpu_custom_call.1} parent=1 // pred_check
      _
    $region27: #{tpu_custom_call.1} parent=1 // pred_check_branch
      %47 = sbr.rel (0) target = $region29
    $region28: #{tpu_custom_call.1} parent=1 // pred_region
      %48 = dma.done [#allocation3], 256
    $region29: #{tpu_custom_call.1} parent=1 // pred_fallthru
      _
    // Predicated region
    $region30: #{tpu_custom_call.1} parent=1 // pred_check
      _
    $region31: #{tpu_custom_call.1} parent=1 // pred_check_branch
      %50 = sbr.rel (0) target = $region33
    $region32: #{tpu_custom_call.1} parent=1 // pred_region
      %51 = dma.done [#allocation6], 1024
    $region33: #{tpu_custom_call.1} parent=1 // pred_fallthru
      _
    %v53 = vlaneseq
    %v54 = vshrl.u32 %v53, 7
    %v55 = vadd.s32 %v54, 8
    %s56 = smul.u32 0, 16
    %v57 = vstv %s56
    %v58 = vadd.s32 %v54, %v57
    %v59 = vadd.s32 %v55, %v57
    %vm60 = vcmp.lt.s32.totalorder %v58, 16
    %vm61 = vcmp.lt.s32.totalorder %v59, 16
    %v62 = vld [vmem:[%s0] sm:$0xff]
    %v63 = vld [vmem:[%s0 + $0x8] sm:$0xff]
    %v64 = vsel %vm60, 1, 0
    %v65 = vsel %vm61, 1, 0
    %vm66 = vcmp.eq.s32.totalorder %v64, 1
    %vm67 = vcmp.eq.s32.totalorder %v65, 1
    %v68 = vsel %vm66, %v62, 0.0
    %v69 = vsel %vm67, %v63, 0.0
    %v70 = vpack.c.bf16 %v69, %v68
    %v71 = vld [vmem:[#allocation2] sm:$0xf]
    %v72 = vld [vmem:[#allocation2 + $0x4] sm:$0xf]
    %v73 = vld [vmem:[#allocation2 + $0x8] sm:$0xf]
    %v74 = vld [vmem:[#allocation2 + $0xc] sm:$0xf]
    %v75 = vld [vmem:[%s3] sm:$0x1]
    %v77 = vlaneseq
    %v78 = vshrl.u32 %v77, 7
    %v79 = vsub.s32 0, %v78
    %v80 = vrot.slane %v75, %v79
    %v86 = vunpack.c.l.b16 %v71
    %v87 = vunpack.c.l.b16 %v72
    %v88 = vunpack.c.l.b16 %v73
    %v89 = vunpack.c.l.b16 %v74
    %v90 = vpack.c.b16 %v87, %v86
    %v91 = vpack.c.b16 %v89, %v88
    %vm94 = vcmask 261120
    %v96 = vsel %vm94, %v70, 0
    %98 = vmatprep.subr.bf16.mxu0 0
    %99 = vmatpush1.bf16.msra.mxu0 %v90
    %100 = vmatprep.subr.bf16.mxu0 0
    %101 = vmatpush1.bf16.msra.mxu0 %v91
    %102 = vmatprep.subr.bf16.mxu0 0
    %103 = vmatpush1.bf16.msra.mxu0 0
    %104 = vmatprep.subr.bf16.mxu0 0
    %105 = vmatpush1.bf16.msra.mxu0 0
    %106 = vmatprep.subr.bf16.mxu0 0
    %107 = vmatpush1.bf16.msra.mxu0 0
    %108 = vmatprep.subr.bf16.mxu0 0
    %109 = vmatpush1.bf16.msra.mxu0 0
    %110 = vmatprep.subr.bf16.mxu0 0
    %111 = vmatpush1.bf16.msra.mxu0 0
    %112 = vmatprep.subr.bf16.mxu0 0
    %113 = vmatpush1.bf16.msra.mxu0 0
    %114 = vmatprep.subr.bf16.mxu0 0
    %115 = vmatpush1.bf16.msra.mxu0 0
    %116 = vmatprep.subr.bf16.mxu0 0
    %117 = vmatpush1.bf16.msra.mxu0 0
    %118 = vmatprep.subr.bf16.mxu0 0
    %119 = vmatpush1.bf16.msra.mxu0 0
    %120 = vmatprep.subr.bf16.mxu0 0
    %121 = vmatpush1.bf16.msra.mxu0 0
    %122 = vmatprep.subr.bf16.mxu0 0
    %123 = vmatpush1.bf16.msra.mxu0 0
    %124 = vmatprep.subr.bf16.mxu0 0
    %125 = vmatpush1.bf16.msra.mxu0 0
    %126 = vmatprep.subr.bf16.mxu0 0
    %127 = vmatpush1.bf16.msra.mxu0 0
    %128 = vmatprep.subr.bf16.mxu0 0
    %129 = vmatpush1.bf16.msra.mxu0 0
    %130 = vmatprep.mubr.bf16.mxu0 0
    %131 = vmatmul.mubr.bf16.gmra.mrb[0].mxu0 %v96
    %v132 = vpop.f32.mrb[0].mxu0
    %v133 = vadd.f32 %v80, %v132
    %v134 = vpop.f32.mrb[0].mxu0
    %v135 = vpop.f32.mrb[0].mxu0
    %v136 = vadd.f32 %v80, %v135
    %v137 = vpop.f32.mrb[0].mxu0
    %138 = vdwg.mxu0
    %v139 = vmax.f32 %v133, 0.0
    %v140 = vmax.f32 %v136, 0.0
    %v141 = vpack.c.bf16 %v140, %v139
    %v142 = vld [vmem:[#allocation5] sm:$0xf]
    %v143 = vld [vmem:[#allocation5 + $0x4] sm:$0xf]
    %v144 = vld [vmem:[#allocation5 + $0x8] sm:$0xf]
    %v145 = vld [vmem:[#allocation5 + $0xc] sm:$0xf]
    %v146 = vld [vmem:[#allocation5 + $0x10] sm:$0xf]
    %v147 = vld [vmem:[#allocation5 + $0x14] sm:$0xf]
    %v148 = vld [vmem:[#allocation5 + $0x18] sm:$0xf]
    %v149 = vld [vmem:[#allocation5 + $0x1c] sm:$0xf]
    %v150 = vld [vmem:[#allocation5 + $0x20] sm:$0xf]
    %v151 = vld [vmem:[#allocation5 + $0x24] sm:$0xf]
    %v152 = vld [vmem:[#allocation5 + $0x28] sm:$0xf]
    %v153 = vld [vmem:[#allocation5 + $0x2c] sm:$0xf]
    %v154 = vld [vmem:[#allocation5 + $0x30] sm:$0xf]
    %v155 = vld [vmem:[#allocation5 + $0x34] sm:$0xf]
    %v156 = vld [vmem:[#allocation5 + $0x38] sm:$0xf]
    %v157 = vld [vmem:[#allocation5 + $0x3c] sm:$0xf]
    %v158 = vld [vmem:[%s5] sm:$0x1]
    %v160 = vlaneseq
    %v161 = vshrl.u32 %v160, 7
    %v162 = vsub.s32 0, %v161
    %v163 = vrot.slane %v158, %v162
    %v181 = vunpack.c.l.b16 %v142
    %v182 = vunpack.c.l.b16 %v143
    %v183 = vunpack.c.l.b16 %v144
    %v184 = vunpack.c.l.b16 %v145
    %v185 = vunpack.c.l.b16 %v146
    %v186 = vunpack.c.l.b16 %v147
    %v187 = vunpack.c.l.b16 %v148
    %v188 = vunpack.c.l.b16 %v149
    %v189 = vunpack.c.l.b16 %v150
    %v190 = vunpack.c.l.b16 %v151
    %v191 = vunpack.c.l.b16 %v152
    %v192 = vunpack.c.l.b16 %v153
    %v193 = vunpack.c.l.b16 %v154
    %v194 = vunpack.c.l.b16 %v155
    %v195 = vunpack.c.l.b16 %v156
    %v196 = vunpack.c.l.b16 %v157
    %v197 = vpack.c.b16 %v182, %v181
    %v198 = vpack.c.b16 %v184, %v183
    %v199 = vpack.c.b16 %v186, %v185
    %v200 = vpack.c.b16 %v188, %v187
    %v201 = vpack.c.b16 %v190, %v189
    %v202 = vpack.c.b16 %v192, %v191
    %v203 = vpack.c.b16 %v194, %v193
    %v204 = vpack.c.b16 %v196, %v195
    %213 = vmatprep.subr.bf16.mxu0 0
    %214 = vmatpush1.bf16.msra.mxu0 %v197
    %215 = vmatprep.subr.bf16.mxu0 0
    %216 = vmatpush1.bf16.msra.mxu0 %v198
    %217 = vmatprep.subr.bf16.mxu0 0
    %218 = vmatpush1.bf16.msra.mxu0 %v199
    %219 = vmatprep.subr.bf16.mxu0 0
    %220 = vmatpush1.bf16.msra.mxu0 %v200
    %221 = vmatprep.subr.bf16.mxu0 0
    %222 = vmatpush1.bf16.msra.mxu0 %v201
    %223 = vmatprep.subr.bf16.mxu0 0
    %224 = vmatpush1.bf16.msra.mxu0 %v202
    %225 = vmatprep.subr.bf16.mxu0 0
    %226 = vmatpush1.bf16.msra.mxu0 %v203
    %227 = vmatprep.subr.bf16.mxu0 0
    %228 = vmatpush1.bf16.msra.mxu0 %v204
    %229 = vmatprep.subr.bf16.mxu0 0
    %230 = vmatpush1.bf16.msra.mxu0 0
    %231 = vmatprep.subr.bf16.mxu0 0
    %232 = vmatpush1.bf16.msra.mxu0 0
    %233 = vmatprep.subr.bf16.mxu0 0
    %234 = vmatpush1.bf16.msra.mxu0 0
    %235 = vmatprep.subr.bf16.mxu0 0
    %236 = vmatpush1.bf16.msra.mxu0 0
    %237 = vmatprep.subr.bf16.mxu0 0
    %238 = vmatpush1.bf16.msra.mxu0 0
    %239 = vmatprep.subr.bf16.mxu0 0
    %240 = vmatpush1.bf16.msra.mxu0 0
    %241 = vmatprep.subr.bf16.mxu0 0
    %242 = vmatpush1.bf16.msra.mxu0 0
    %243 = vmatprep.subr.bf16.mxu0 0
    %244 = vmatpush1.bf16.msra.mxu0 0
    %245 = vmatprep.mubr.bf16.mxu0 0
    %246 = vmatmul.mubr.bf16.gmra.mrb[0].mxu0 %v141
    %v247 = vpop.f32.mrb[0].mxu0
    %v248 = vadd.f32 %v163, %v247
    %v249 = vpop.f32.mrb[0].mxu0
    %v250 = vpop.f32.mrb[0].mxu0
    %v251 = vadd.f32 %v163, %v250
    %v252 = vpop.f32.mrb[0].mxu0
    %253 = vdwg.mxu0
    %254 = vmax.xlane.f32.xlu0 %v248
    %v255 = vpop.xlane.xlu0 %254
    %256 = vmax.xlane.f32.xlu0 %v251
    %v257 = vpop.xlane.xlu0 %256
    %v258 = vsub.f32 %v248, %v255
    %v259 = vsub.f32 %v251, %v257
    %v260 = vmul.f32 %v258, 1.442695
    %v261 = vpow.pop %v260
    %v262 = vmul.f32 %v259, 1.442695
    %v263 = vpow.pop %v262
    %264 = vadd.xlane.f32.xlu0 %v261
    %v265 = vpop.xlane.xlu0 %264
    %266 = vadd.xlane.f32.xlu0 %v263
    %v267 = vpop.xlane.xlu0 %266
    %v268 = vlog2.pop %v265
    %v269 = vmul.f32 %v268, 0.6931472
    %v270 = vlog2.pop %v267
    %v271 = vmul.f32 %v270, 0.6931472
    %v272 = vadd.f32 %v255, %v269
    %v273 = vadd.f32 %v257, %v271
    %v274 = vlaneseq
    %v275 = vand.u32 %v274, 127
    %v276 = vld [vmem:[%s1] sm:$0xff]
    %v277 = vld [vmem:[%s1 + $0x8] sm:$0xff]
    %278 = vset.pattern.permute.xlu0 0
    %279 = vperm.xlu0 %278, %v276
    %v280 = vpop.permute.xlu0 %279
    %281 = vset.pattern.permute.xlu0 0
    %282 = vperm.xlu0 %281, %v277
    %v283 = vpop.permute.xlu0 %282
    %vm284 = vcmp.eq.s32.totalorder %v275, %v280
    %vm285 = vcmp.eq.s32.totalorder %v275, %v283
    %v286 = vsel %vm284, %v248, 0.0
    %v287 = vsel %vm285, %v251, 0.0
    %288 = vadd.xlane.f32.xlu0 %v286
    %v289 = vpop.xlane.xlu0 %288
    %290 = vadd.xlane.f32.xlu0 %v287
    %v291 = vpop.xlane.xlu0 %290
    %v292 = vsub.f32 %v272, %v289
    %v293 = vsub.f32 %v273, %v291
    %v294 = vsel %vm60, %v292, 0.0
    %v295 = vsel %vm61, %v293, 0.0
    %v296 = vadd.f32 %v294, %v295
    %v297 = vrot.slane %v296, 4
    %v298 = vadd.f32 %v296, %v297
    %v299 = vrot.slane %v298, 2
    %v300 = vadd.f32 %v298, %v299
    %v301 = vrot.slane %v300, 1
    %v302 = vadd.f32 %v300, %v301
    %vm303 = vcmask 0
    %304 = vst.msk [vmem:[#allocation7] sm:$0x1] %vm303, %v302
    // Predicated region
    $region34: #{tpu_custom_call.1} parent=1 // pred_check
      _
    $region35: #{tpu_custom_call.1} parent=1 // pred_check_branch
      %306 = sbr.rel (0) target = $region37
    $region36: #{tpu_custom_call.1} parent=1 // pred_region
      %s308 = ssub.s32 16, 16
      %309 = vsyncadd [#allocation4], %s308
      %s311 = sshll.u32 [#allocation7], 4
      %s312 = int_to_ptr.vmem [resolvable:$true] %s311
      %314 = dma.vmem_to_hbm [thread:$0]  %s312, 16, %s6, [#allocation4]
    $region37: #{tpu_custom_call.1} parent=1 // pred_fallthru
      _
    // Predicated region
    $region38: #{tpu_custom_call.1} parent=1 // pred_check
      _
    $region39: #{tpu_custom_call.1} parent=1 // pred_check_branch
      %316 = sbr.rel (0) target = $region41
    $region40: #{tpu_custom_call.1} parent=1 // pred_region
      %317 = dma.done [#allocation4], 16
    $region41: #{tpu_custom_call.1} parent=1 // pred_fallthru
      _
    %318 = vsyncpa [#allocation3], 1
    %319 = vsyncpa [#allocation6], 1
    %320 = vsyncpa [#allocation4], 1

</llo_original>
